<compile_context>
chip_gen: v7x
topology: tpu7x:2x2x1
jax: 0.10.0
libtpu: 0.0.40
codegen_flags: <defaults>
</compile_context>

<pallas_src>
import math

import jax
import jax.numpy as jnp
from jax.experimental import pallas as pl
from jax.experimental.pallas import tpu as pltpu

MAX_TILE_ROWS = 1024   # per-tile batch rows (tile-scaling sweet spot)
SMALL_BATCH = 64       # below this a single tile (in-kernel sampling fusion) wins


def _round_up(x, m):
    return ((x + m - 1) // m) * m


def _softplus(r):
    # numerically-safe softplus: max(r,0) + log1p(exp(-|r|))
    return jnp.maximum(r, 0.0) + jnp.log1p(jnp.exp(-jnp.abs(r)))


def _mlp(x, w0, b0, w1, b1, out_dtype):
    """relu(x@w0+b0) @ w1 + b1 -> log_softmax.  Matmul accumulation and the
    softmax max/exp/log math are always f32; x/w may be bf16."""
    cd = x.dtype
    h = jnp.dot(x, w0.astype(cd), preferred_element_type=jnp.float32)
    h = jnp.maximum(h + b0.astype(jnp.float32), 0.0).astype(cd)
    y = jnp.dot(h, w1.astype(cd), preferred_element_type=jnp.float32)
    y = y + b1.astype(jnp.float32)
    m = jnp.max(y, axis=-1, keepdims=True)
    z = y - m
    lse = jnp.log(jnp.sum(jnp.exp(z), axis=-1, keepdims=True))
    return (z - lse).astype(out_dtype)


def _det_kernel(x_ref, w0_ref, b0_ref, w1_ref, b1_ref, o_ref):
    o_ref[...] = _mlp(x_ref[...], w0_ref[...], b0_ref[...],
                      w1_ref[...], b1_ref[...], o_ref.dtype)


def _sample_kernel(x_ref,
                   w0mu, w0rho, w0eps, b0mu, b0rho, b0eps,
                   w1mu, w1rho, w1eps, b1mu, b1rho, b1eps,
                   o_ref):
    # single-tile path: fuse the reparameterized draw in-kernel (no extra dispatches)
    w0 = w0mu[...] + _softplus(w0rho[...]) * w0eps[...]
    b0 = b0mu[...] + _softplus(b0rho[...]) * b0eps[...]
    w1 = w1mu[...] + _softplus(w1rho[...]) * w1eps[...]
    b1 = b1mu[...] + _softplus(b1rho[...]) * b1eps[...]
    o_ref[...] = _mlp(x_ref[...], w0, b0, w1, b1, o_ref.dtype)


def _choose_tile(B):
    """Pick (block_b, n_tiles): single tile for tiny batches; otherwise >= 2
    tiles (v7x megacore) with minimal batch padding, capped at MAX_TILE_ROWS."""
    if B <= SMALL_BATCH:
        return _round_up(max(B, 1), 8), 1
    n_tiles = max(2, -(-B // MAX_TILE_ROWS))
    block_b = _round_up(-(-B // n_tiles), 8)
    n_tiles = -(-B // block_b)
    return block_b, n_tiles


def _draw_eps(key, params):
    """One flat normal draw (single RNG dispatch), reshaped to parameter layout."""
    shapes = [params["fc0_w_mu_t"].shape, params["fc0_b_mu"].shape,
              params["fc1_w_mu_t"].shape, params["fc1_b_mu"].shape]
    sizes = [math.prod(s) for s in shapes]
    flat = jax.random.normal(key, (sum(sizes),), jnp.float32)
    names = ("w0", "b0", "w1", "b1")
    eps, off = {}, 0
    for n, s, sz in zip(names, shapes, sizes):
        eps[n] = flat[off:off + sz].reshape(s)
        off += sz
    return eps


def bayesian_qnetwork_forward(x, params, sample, key=None, block_b=None,
                              io_dtype=jnp.float32):
    """Forward pass of Bayesian_QNetwork with hiddens=[64]."""
    B, IN = x.shape
    OUT = params["out_dim"]

    if block_b is None:
        block_b, n_tiles = _choose_tile(B)
    else:
        block_b = _round_up(block_b, 8)
        n_tiles = -(-B // block_b)
    B_pad = block_b * n_tiles

    x = x.astype(io_dtype)
    if B_pad != B:
        x = jnp.pad(x, ((0, B_pad - B), (0, 0)))

    if sample:
        assert key is not None, "sample=True requires a PRNG key"
        eps = _draw_eps(key, params)

    use_in_kernel_sampling = sample and n_tiles == 1

    if use_in_kernel_sampling:
        kernel = _sample_kernel
        inputs = (x,
                  params["fc0_w_mu_t"], params["fc0_w_rho_t"], eps["w0"],
                  params["fc0_b_mu"], params["fc0_b_rho"], eps["b0"],
                  params["fc1_w_mu_t"], params["fc1_w_rho_t"], eps["w1"],
                  params["fc1_b_mu"], params["fc1_b_rho"], eps["b1"])
    else:
        kernel = _det_kernel
        if sample:
            # multi-tile grid: realize weights ONCE in the wrapper (one fused
            # XLA elementwise op) instead of re-doing softplus per batch tile.
            w0 = params["fc0_w_mu_t"] + _softplus(params["fc0_w_rho_t"]) * eps["w0"]
            b0 = params["fc0_b_mu"] + _softplus(params["fc0_b_rho"]) * eps["b0"]
            w1 = params["fc1_w_mu_t"] + _softplus(params["fc1_w_rho_t"]) * eps["w1"]
            b1 = params["fc1_b_mu"] + _softplus(params["fc1_b_rho"]) * eps["b1"]
        else:
            w0, b0 = params["fc0_w_mu_t"], params["fc0_b_mu"]
            w1, b1 = params["fc1_w_mu_t"], params["fc1_b_mu"]
        inputs = (x, w0.astype(io_dtype), b0, w1.astype(io_dtype), b1)

    # x / output tiled over the 1-D batch grid; weights stay VMEM-resident
    # across batch tiles (constant index_map).
    x_spec = pl.BlockSpec((block_b, IN), lambda i: (i, 0))
    o_spec = pl.BlockSpec((block_b, OUT), lambda i: (i, 0))

    def full_spec(arr):
        return pl.BlockSpec(arr.shape, lambda i, _nd=arr.ndim: (0,) * _nd)

    in_specs = [x_spec] + [full_spec(a) for a in inputs[1:]]

    out = pl.pallas_call(
        kernel,
        out_shape=jax.ShapeDtypeStruct((B_pad, OUT), io_dtype),
        grid=(n_tiles,),
        in_specs=in_specs,
        out_specs=o_spec,
        compiler_params=pltpu.CompilerParams(
            dimension_semantics=("parallel",)),
    )(*inputs)
    return out if B_pad == B else out[:B]


def init_params(key, in_dim, hidden, out_dim):
    """Uniform(-1,1) init matching Bayesian_layer.__init__, transformed ONCE to
    the kernel-friendly layout: weights (in, out), biases (1, out)."""
    ks = jax.random.split(key, 8)
    u = lambda k, shape: jax.random.uniform(k, shape, jnp.float32, -1.0, 1.0)
    w0_mu, w0_rho = u(ks[0], (hidden, in_dim)), u(ks[1], (hidden, in_dim))
    b0_mu, b0_rho = u(ks[2], (hidden,)), u(ks[3], (hidden,))
    w1_mu, w1_rho = u(ks[4], (out_dim, hidden)), u(ks[5], (out_dim, hidden))
    b1_mu, b1_rho = u(ks[6], (out_dim,)), u(ks[7], (out_dim,))
    return {
        "fc0_w_mu_t": w0_mu.T, "fc0_w_rho_t": w0_rho.T,
        "fc0_b_mu": b0_mu.reshape(1, -1), "fc0_b_rho": b0_rho.reshape(1, -1),
        "fc1_w_mu_t": w1_mu.T, "fc1_w_rho_t": w1_rho.T,
        "fc1_b_mu": b1_mu.reshape(1, -1), "fc1_b_rho": b1_rho.reshape(1, -1),
        "out_dim": out_dim,
    }


def _reference_forward(x, params, sample, key=None):
    """Pure-JAX reference (same eps draw as the kernel path for parity)."""
    if sample:
        eps = _draw_eps(key, params)
        w0 = params["fc0_w_mu_t"] + _softplus(params["fc0_w_rho_t"]) * eps["w0"]
        b0 = params["fc0_b_mu"] + _softplus(params["fc0_b_rho"]) * eps["b0"]
        w1 = params["fc1_w_mu_t"] + _softplus(params["fc1_w_rho_t"]) * eps["w1"]
        b1 = params["fc1_b_mu"] + _softplus(params["fc1_b_rho"]) * eps["b1"]
    else:
        w0, b0 = params["fc0_w_mu_t"], params["fc0_b_mu"]
        w1, b1 = params["fc1_w_mu_t"], params["fc1_b_mu"]
    h = jnp.maximum(x @ w0 + b0, 0.0)
    y = h @ w1 + b1
    return jax.nn.log_softmax(y, axis=-1)


if __name__ == "__main__":
    IN_DIM, HIDDEN, OUT_DIM = 16, 64, 8

    root = jax.random.PRNGKey(0)
    k_params, k_x_small, k_x_big, k_sample = jax.random.split(root, 4)

    params = init_params(k_params, IN_DIM, HIDDEN, OUT_DIM)

    # --- small batch: single tile, in-kernel sampled-weight fusion ---
    x_small = jax.random.normal(k_x_small, (4, IN_DIM), jnp.float32)

    out_det = jax.block_until_ready(
        bayesian_qnetwork_forward(x_small, params, sample=False))
    ref_det = _reference_forward(x_small, params, sample=False)
    assert out_det.shape == (4, OUT_DIM)
    assert jnp.allclose(out_det, ref_det, atol=1e-4, rtol=1e-4)

    out_smp = jax.block_until_ready(
        bayesian_qnetwork_forward(x_small, params, sample=True, key=k_sample))
    ref_smp = _reference_forward(x_small, params, sample=True, key=k_sample)
    assert out_smp.shape == (4, OUT_DIM)
    assert jnp.allclose(out_smp, ref_smp, atol=1e-4, rtol=1e-4)

    # --- larger batch: multi-tile grid (>=2 tiles), wrapper-hoisted weight draw ---
    x_big = jax.random.normal(k_x_big, (300, IN_DIM), jnp.float32)
    out_big = jax.block_until_ready(
        bayesian_qnetwork_forward(x_big, params, sample=True, key=k_sample))
    ref_big = _reference_forward(x_big, params, sample=True, key=k_sample)
    assert out_big.shape == (300, OUT_DIM)
    assert jnp.allclose(out_big, ref_big, atol=1e-4, rtol=1e-4)

    # --- optional bf16 I/O path (halves HBM traffic; math stays f32) ---
    out_bf16 = jax.block_until_ready(
        bayesian_qnetwork_forward(x_big, params, sample=False,
                                  io_dtype=jnp.bfloat16))
    ref_f32 = _reference_forward(x_big, params, sample=False)
    assert out_bf16.shape == (300, OUT_DIM)
    out_bf16_f32 = out_bf16.astype(jnp.float32)
    assert bool(jnp.all(jnp.isfinite(out_bf16_f32)))
    assert float(jnp.max(jnp.abs(out_bf16_f32 - ref_f32))) < 1.0

    print("KERNEL_OK")
</pallas_src>

<mosaic_0001>
module attributes {stable_mosaic.version = 11 : i64} {
  func.func @_det_kernel(%arg0: i32, %arg1: memref<8x16xf32, #tpu.memory_space<vmem>>, %arg2: memref<16x64xf32, #tpu.memory_space<vmem>>, %arg3: memref<1x64xf32, #tpu.memory_space<vmem>>, %arg4: memref<64x8xf32, #tpu.memory_space<vmem>>, %arg5: memref<1x8xf32, #tpu.memory_space<vmem>>, %arg6: memref<8x8xf32, #tpu.memory_space<vmem>>) attributes {dimension_semantics = [#tpu.dimension_semantics<parallel>], iteration_bounds = array<i64: 1>, scalar_prefetch = 0 : i64, scratch_operands = 0 : i64, tpu.core_type = #tpu.core_type<tc>, window_params = [{transform_indices = @transform_0, window_bounds = array<i64: 8, 16>}, {pipeline_mode = #tpu.pipeline_mode<synchronous>, transform_indices = @transform_1, window_bounds = array<i64: 16, 64>}, {pipeline_mode = #tpu.pipeline_mode<synchronous>, transform_indices = @transform_2, window_bounds = array<i64: 1, 64>}, {pipeline_mode = #tpu.pipeline_mode<synchronous>, transform_indices = @transform_3, window_bounds = array<i64: 64, 8>}, {pipeline_mode = #tpu.pipeline_mode<synchronous>, transform_indices = @transform_4, window_bounds = array<i64: 1, 8>}, {transform_indices = @transform_5, window_bounds = array<i64: 8, 8>}]} {
    %c0 = arith.constant 0 : index
    %c0_0 = arith.constant 0 : index
    %0 = vector.load %arg1[%c0, %c0_0] : memref<8x16xf32, #tpu.memory_space<vmem>>, vector<8x16xf32>
    %c0_1 = arith.constant 0 : index
    %c0_2 = arith.constant 0 : index
    %1 = vector.load %arg2[%c0_1, %c0_2] : memref<16x64xf32, #tpu.memory_space<vmem>>, vector<16x64xf32>
    %c0_3 = arith.constant 0 : index
    %c0_4 = arith.constant 0 : index
    %2 = vector.load %arg3[%c0_3, %c0_4] : memref<1x64xf32, #tpu.memory_space<vmem>>, vector<1x64xf32>
    %c0_5 = arith.constant 0 : index
    %c0_6 = arith.constant 0 : index
    %3 = vector.load %arg4[%c0_5, %c0_6] : memref<64x8xf32, #tpu.memory_space<vmem>>, vector<64x8xf32>
    %c0_7 = arith.constant 0 : index
    %c0_8 = arith.constant 0 : index
    %4 = vector.load %arg5[%c0_7, %c0_8] : memref<1x8xf32, #tpu.memory_space<vmem>>, vector<1x8xf32>
    %cst = arith.constant dense<0.000000e+00> : vector<8x64xf32>
    %5 = tpu.matmul %0, %1, %cst {dimension_numbers = #tpu.dot_dimension_numbers<[1], [0], [0], [1], [0, 0, 1, 1], [], []>} : vector<8x16xf32>, vector<16x64xf32>, vector<8x64xf32> -> vector<8x64xf32>
    %6 = vector.broadcast %2 : vector<1x64xf32> to vector<8x64xf32>
    %7 = arith.addf %5, %6 : vector<8x64xf32>
    %cst_9 = arith.constant 0.000000e+00 : f32
    %8 = vector.broadcast %cst_9 : f32 to vector<8x64xf32>
    %9 = arith.maximumf %7, %8 : vector<8x64xf32>
    %cst_10 = arith.constant dense<0.000000e+00> : vector<8x8xf32>
    %10 = tpu.matmul %9, %3, %cst_10 {dimension_numbers = #tpu.dot_dimension_numbers<[1], [0], [0], [1], [0, 0, 1, 1], [], []>} : vector<8x64xf32>, vector<64x8xf32>, vector<8x8xf32> -> vector<8x8xf32>
    %11 = vector.broadcast %4 : vector<1x8xf32> to vector<8x8xf32>
    %12 = arith.addf %10, %11 : vector<8x8xf32>
    %cst_11 = arith.constant dense<0xFF800000> : vector<8xf32>
    %13 = vector.multi_reduction <maximumf>, %12, %cst_11 [1] : vector<8x8xf32> to vector<8xf32>
    %14 = vector.shape_cast %13 : vector<8xf32> to vector<8x1xf32>
    %15 = vector.broadcast %14 : vector<8x1xf32> to vector<8x8xf32>
    %16 = arith.subf %12, %15 : vector<8x8xf32>
    %17 = math.exp %16 : vector<8x8xf32>
    %cst_12 = arith.constant dense<0.000000e+00> : vector<8xf32>
    %18 = vector.multi_reduction <add>, %17, %cst_12 [1] : vector<8x8xf32> to vector<8xf32>
    %19 = vector.shape_cast %18 : vector<8xf32> to vector<8x1xf32>
    %20 = math.log %19 : vector<8x1xf32>
    %21 = vector.broadcast %20 : vector<8x1xf32> to vector<8x8xf32>
    %22 = arith.subf %16, %21 : vector<8x8xf32>
    %c0_13 = arith.constant 0 : index
    %c0_14 = arith.constant 0 : index
    %23 = vector.load %arg6[%c0_13, %c0_14] : memref<8x8xf32, #tpu.memory_space<vmem>>, vector<8x8xf32>
    tpu.vector_store %arg6[%c0_13, %c0_14], %22 {strides = array<i32>} : memref<8x8xf32, #tpu.memory_space<vmem>>, vector<8x8xf32>,
    return
  }
  func.func @transform_0(%arg0: i32) -> (i32, i32) {
    %c0_i32 = arith.constant 0 : i32
    %c0_i32_0 = arith.constant 0 : i32
    return %arg0, %c0_i32 : i32, i32
  }
  func.func @transform_1(%arg0: i32) -> (i32, i32) {
    %c0_i32 = arith.constant 0 : i32
    %c0_i32_0 = arith.constant 0 : i32
    %c0_i32_1 = arith.constant 0 : i32
    return %c0_i32, %c0_i32_0 : i32, i32
  }
  func.func @transform_2(%arg0: i32) -> (i32, i32) {
    %c0_i32 = arith.constant 0 : i32
    %c0_i32_0 = arith.constant 0 : i32
    %c0_i32_1 = arith.constant 0 : i32
    return %c0_i32, %c0_i32_0 : i32, i32
  }
  func.func @transform_3(%arg0: i32) -> (i32, i32) {
    %c0_i32 = arith.constant 0 : i32
    %c0_i32_0 = arith.constant 0 : i32
    %c0_i32_1 = arith.constant 0 : i32
    return %c0_i32, %c0_i32_0 : i32, i32
  }
  func.func @transform_4(%arg0: i32) -> (i32, i32) {
    %c0_i32 = arith.constant 0 : i32
    %c0_i32_0 = arith.constant 0 : i32
    %c0_i32_1 = arith.constant 0 : i32
    return %c0_i32, %c0_i32_0 : i32, i32
  }
  func.func @transform_5(%arg0: i32) -> (i32, i32) {
    %c0_i32 = arith.constant 0 : i32
    %c0_i32_0 = arith.constant 0 : i32
    return %arg0, %c0_i32 : i32, i32
  }
}

</mosaic_0001>

<llo_original>
// kernel: tpu_custom_call.1
$region0: #{tpu_custom_call.1}
  #allocation0 [shape = 'u32[]', space=smem, size = 0x4, offset = 0x4, fixed_abs, tag = 'smem constant byte address 0x4 - core index']
  #allocation1 [shape = 'u32[144,128]{1,0:T(1,128)}', space=vmem, size = 0x12000, scoped, tag = 'internal scratch']
  %s0 = inlined_call_operand.vmem [shape: f32[8,16], index: 0, kind: input, shape index: {}]
  %s1 = inlined_call_operand.vmem [shape: f32[16,64], index: 1, kind: input, shape index: {}]
  %s2 = inlined_call_operand.vmem [shape: f32[1,64], index: 2, kind: input, shape index: {}]
  %s3 = inlined_call_operand.vmem [shape: f32[64,8], index: 3, kind: input, shape index: {}]
  %s4 = inlined_call_operand.vmem [shape: f32[1,8], index: 4, kind: input, shape index: {}]
  %s5 = inlined_call_operand.hbm [shape: f32[8,8], index: 5, kind: output, shape index: {}]
  %s6 = sld [smem:[#allocation0]]
  $region30: #{tpu_custom_call.1} parent=0
    _
  %s8 = ssub.s32 1, %s6
  %s9 = scalar_select 0, %s8, %s6
  $region1: #{tpu_custom_call.1} parent=0
    #allocation2 [shape = 'u8[4096]{0}', space=vmem, size = 0x1000, scoped, tag = 'output window, operand 0, single buffered']
    #allocation3 [shape = 's32[1]{0}', space=sflag, size = 0x4, scoped, tag = 'scoped memory for tpu_custom_call.1']
    %10 = vsyncpa [#allocation3], 0
    // Predicated region
    $region2: #{tpu_custom_call.1} parent=1 // pred_check
      _
    $region3: #{tpu_custom_call.1} parent=1 // pred_check_branch
      %12 = sbr.rel (0) target = $region5
    $region4: #{tpu_custom_call.1} parent=1 // pred_region
      _
    $region5: #{tpu_custom_call.1} parent=1 // pred_fallthru
      _
    // Predicated region
    $region6: #{tpu_custom_call.1} parent=1 // pred_check
      _
    $region7: #{tpu_custom_call.1} parent=1 // pred_check_branch
      %14 = sbr.rel (0) target = $region9
    $region8: #{tpu_custom_call.1} parent=1 // pred_region
      _
    $region9: #{tpu_custom_call.1} parent=1 // pred_fallthru
      _
    // Predicated region
    $region10: #{tpu_custom_call.1} parent=1 // pred_check
      _
    $region11: #{tpu_custom_call.1} parent=1 // pred_check_branch
      %16 = sbr.rel (0) target = $region13
    $region12: #{tpu_custom_call.1} parent=1 // pred_region
      _
    $region13: #{tpu_custom_call.1} parent=1 // pred_fallthru
      _
    // Predicated region
    $region14: #{tpu_custom_call.1} parent=1 // pred_check
      _
    $region15: #{tpu_custom_call.1} parent=1 // pred_check_branch
      %18 = sbr.rel (0) target = $region17
    $region16: #{tpu_custom_call.1} parent=1 // pred_region
      _
    $region17: #{tpu_custom_call.1} parent=1 // pred_fallthru
      _
    // Predicated region
    $region18: #{tpu_custom_call.1} parent=1 // pred_check
      _
    $region19: #{tpu_custom_call.1} parent=1 // pred_check_branch
      %20 = sbr.rel (0) target = $region21
    $region20: #{tpu_custom_call.1} parent=1 // pred_region
      _
    $region21: #{tpu_custom_call.1} parent=1 // pred_fallthru
      _
    %v21 = vld [vmem:[%s0] sm:$0xff]
    %v22 = vld [vmem:[%s1] sm:$0xff]
    %v23 = vld [vmem:[%s1 + $0x8] sm:$0xff]
    %v24 = vld [vmem:[%s2] sm:$0x1]
    %v25 = vld [vmem:[%s3] sm:$0xff]
    %v26 = vld [vmem:[%s3 + $0x8] sm:$0xff]
    %v27 = vld [vmem:[%s3 + $0x10] sm:$0xff]
    %v28 = vld [vmem:[%s3 + $0x18] sm:$0xff]
    %v29 = vld [vmem:[%s3 + $0x20] sm:$0xff]
    %v30 = vld [vmem:[%s3 + $0x28] sm:$0xff]
    %v31 = vld [vmem:[%s3 + $0x30] sm:$0xff]
    %v32 = vld [vmem:[%s3 + $0x38] sm:$0xff]
    %v33 = vld [vmem:[%s4] sm:$0x1]
    %v35 = vlaneseq
    %v36 = vshrl.u32 %v35, 7
    %v37 = vsub.s32 0, %v36
    %v38 = vrot.slane %v24, %v37
    %vm40 = vcmask 130048
    %v42 = vsel %vm40, %v21, 0
    %44 = vmatprep.subr.mxu0 0.0
    %45 = vmatpush1.msra.mxu0 %v22
    %46 = vmatprep.subr.mxu0 0.0
    %47 = vmatpush1.msra.mxu0 %v23
    %48 = vmatprep.subr.mxu0 0.0
    %49 = vmatpush1.msra.mxu0 0.0
    %50 = vmatprep.subr.mxu0 0.0
    %51 = vmatpush1.msra.mxu0 0.0
    %52 = vmatprep.subr.mxu0 0.0
    %53 = vmatpush1.msra.mxu0 0.0
    %54 = vmatprep.subr.mxu0 0.0
    %55 = vmatpush1.msra.mxu0 0.0
    %56 = vmatprep.subr.mxu0 0.0
    %57 = vmatpush1.msra.mxu0 0.0
    %58 = vmatprep.subr.mxu0 0.0
    %59 = vmatpush1.msra.mxu0 0.0
    %60 = vmatprep.subr.mxu0 0.0
    %61 = vmatpush1.msra.mxu0 0.0
    %62 = vmatprep.subr.mxu0 0.0
    %63 = vmatpush1.msra.mxu0 0.0
    %64 = vmatprep.subr.mxu0 0.0
    %65 = vmatpush1.msra.mxu0 0.0
    %66 = vmatprep.subr.mxu0 0.0
    %67 = vmatpush1.msra.mxu0 0.0
    %68 = vmatprep.subr.mxu0 0.0
    %69 = vmatpush1.msra.mxu0 0.0
    %70 = vmatprep.subr.mxu0 0.0
    %71 = vmatpush1.msra.mxu0 0.0
    %72 = vmatprep.subr.mxu0 0.0
    %73 = vmatpush1.msra.mxu0 0.0
    %74 = vmatprep.subr.mxu0 0.0
    %75 = vmatpush1.msra.mxu0 0.0
    %76 = vmatprep.subr.mxu0 0.0
    %77 = vmatpush1.msra.mxu0 0.0
    %78 = vmatprep.subr.mxu0 0.0
    %79 = vmatpush1.msra.mxu0 0.0
    %80 = vmatprep.subr.mxu0 0.0
    %81 = vmatpush1.msra.mxu0 0.0
    %82 = vmatprep.subr.mxu0 0.0
    %83 = vmatpush1.msra.mxu0 0.0
    %84 = vmatprep.subr.mxu0 0.0
    %85 = vmatpush1.msra.mxu0 0.0
    %86 = vmatprep.subr.mxu0 0.0
    %87 = vmatpush1.msra.mxu0 0.0
    %88 = vmatprep.subr.mxu0 0.0
    %89 = vmatpush1.msra.mxu0 0.0
    %90 = vmatprep.subr.mxu0 0.0
    %91 = vmatpush1.msra.mxu0 0.0
    %92 = vmatprep.subr.mxu0 0.0
    %93 = vmatpush1.msra.mxu0 0.0
    %94 = vmatprep.subr.mxu0 0.0
    %95 = vmatpush1.msra.mxu0 0.0
    %96 = vmatprep.subr.mxu0 0.0
    %97 = vmatpush1.msra.mxu0 0.0
    %98 = vmatprep.subr.mxu0 0.0
    %99 = vmatpush1.msra.mxu0 0.0
    %100 = vmatprep.subr.mxu0 0.0
    %101 = vmatpush1.msra.mxu0 0.0
    %102 = vmatprep.subr.mxu0 0.0
    %103 = vmatpush1.msra.mxu0 0.0
    %104 = vmatprep.subr.mxu0 0.0
    %105 = vmatpush1.msra.mxu0 0.0
    %106 = vmatprep.subr.mxu0 0.0
    %107 = vmatpush1.msra.mxu0 0.0
    %108 = vmatprep.mubr.f32.mxu0 0.0
    %109 = vmatmul.mubr.f32.gmra.mrb[0].mxu0 %v42
    %v110 = vpop.f32.mrb[0].mxu0
    %v111 = vadd.f32 %v38, %v110
    %v112 = vpop.f32.mrb[0].mxu0
    %113 = vdwg.mxu0
    %v114 = vmax.f32 %v111, 0.0
    %v116 = vlaneseq
    %v117 = vshrl.u32 %v116, 7
    %v118 = vsub.s32 0, %v117
    %v119 = vrot.slane %v33, %v118
    %vm121 = vcmask 523264
    %v123 = vsel %vm121, %v114, 0
    %125 = vmatprep.subr.mxu0 0.0
    %126 = vmatpush1.msra.mxu0 %v25
    %127 = vmatprep.subr.mxu0 0.0
    %128 = vmatpush1.msra.mxu0 %v26
    %129 = vmatprep.subr.mxu0 0.0
    %130 = vmatpush1.msra.mxu0 %v27
    %131 = vmatprep.subr.mxu0 0.0
    %132 = vmatpush1.msra.mxu0 %v28
    %133 = vmatprep.subr.mxu0 0.0
    %134 = vmatpush1.msra.mxu0 %v29
    %135 = vmatprep.subr.mxu0 0.0
    %136 = vmatpush1.msra.mxu0 %v30
    %137 = vmatprep.subr.mxu0 0.0
    %138 = vmatpush1.msra.mxu0 %v31
    %139 = vmatprep.subr.mxu0 0.0
    %140 = vmatpush1.msra.mxu0 %v32
    %141 = vmatprep.subr.mxu0 0.0
    %142 = vmatpush1.msra.mxu0 0.0
    %143 = vmatprep.subr.mxu0 0.0
    %144 = vmatpush1.msra.mxu0 0.0
    %145 = vmatprep.subr.mxu0 0.0
    %146 = vmatpush1.msra.mxu0 0.0
    %147 = vmatprep.subr.mxu0 0.0
    %148 = vmatpush1.msra.mxu0 0.0
    %149 = vmatprep.subr.mxu0 0.0
    %150 = vmatpush1.msra.mxu0 0.0
    %151 = vmatprep.subr.mxu0 0.0
    %152 = vmatpush1.msra.mxu0 0.0
    %153 = vmatprep.subr.mxu0 0.0
    %154 = vmatpush1.msra.mxu0 0.0
    %155 = vmatprep.subr.mxu0 0.0
    %156 = vmatpush1.msra.mxu0 0.0
    %157 = vmatprep.subr.mxu0 0.0
    %158 = vmatpush1.msra.mxu0 0.0
    %159 = vmatprep.subr.mxu0 0.0
    %160 = vmatpush1.msra.mxu0 0.0
    %161 = vmatprep.subr.mxu0 0.0
    %162 = vmatpush1.msra.mxu0 0.0
    %163 = vmatprep.subr.mxu0 0.0
    %164 = vmatpush1.msra.mxu0 0.0
    %165 = vmatprep.subr.mxu0 0.0
    %166 = vmatpush1.msra.mxu0 0.0
    %167 = vmatprep.subr.mxu0 0.0
    %168 = vmatpush1.msra.mxu0 0.0
    %169 = vmatprep.subr.mxu0 0.0
    %170 = vmatpush1.msra.mxu0 0.0
    %171 = vmatprep.subr.mxu0 0.0
    %172 = vmatpush1.msra.mxu0 0.0
    %173 = vmatprep.subr.mxu0 0.0
    %174 = vmatpush1.msra.mxu0 0.0
    %175 = vmatprep.subr.mxu0 0.0
    %176 = vmatpush1.msra.mxu0 0.0
    %177 = vmatprep.subr.mxu0 0.0
    %178 = vmatpush1.msra.mxu0 0.0
    %179 = vmatprep.subr.mxu0 0.0
    %180 = vmatpush1.msra.mxu0 0.0
    %181 = vmatprep.subr.mxu0 0.0
    %182 = vmatpush1.msra.mxu0 0.0
    %183 = vmatprep.subr.mxu0 0.0
    %184 = vmatpush1.msra.mxu0 0.0
    %185 = vmatprep.subr.mxu0 0.0
    %186 = vmatpush1.msra.mxu0 0.0
    %187 = vmatprep.subr.mxu0 0.0
    %188 = vmatpush1.msra.mxu0 0.0
    %189 = vmatprep.mubr.f32.mxu0 0.0
    %190 = vmatmul.mubr.f32.gmra.mrb[0].mxu0 %v123
    %v191 = vpop.f32.mrb[0].mxu0
    %v192 = vadd.f32 %v119, %v191
    %v193 = vpop.f32.mrb[0].mxu0
    %194 = vdwg.mxu0
    %vm195 = vcmask 64512
    %v196 = vsel %vm195, %v192, -inf
    %197 = vmax.xlane.f32.xlu0 %v196
    %v198 = vpop.xlane.xlu0 %197
    %v199 = vsub.f32 %v192, %v198
    %v200 = vmul.f32 %v199, 1.442695
    %v201 = vpow.pop %v200
    %v202 = vsel %vm195, %v201, 0.0
    %203 = vadd.xlane.f32.xlu0 %v202
    %v204 = vpop.xlane.xlu0 %203
    %v205 = vlog2.pop %v204
    %v206 = vmul.f32 %v205, 0.6931472
    %v207 = vsub.f32 %v199, %v206
    %208 = vst.msk [vmem:[#allocation2] sm:$0xff] %vm195, %v207
    // Predicated region
    $region22: #{tpu_custom_call.1} parent=1 // pred_check
      _
    $region23: #{tpu_custom_call.1} parent=1 // pred_check_branch
      %210 = sbr.rel (0) target = $region25
    $region24: #{tpu_custom_call.1} parent=1 // pred_region
      %s212 = ssub.s32 128, 128
      %213 = vsyncadd [#allocation3], %s212
      %s215 = sshll.u32 [#allocation2], 4
      %s216 = int_to_ptr.vmem [resolvable:$true] %s215
      %218 = dma.vmem_to_hbm [thread:$0]  %s216, 128, %s5, [#allocation3]
    $region25: #{tpu_custom_call.1} parent=1 // pred_fallthru
      _
    // Predicated region
    $region26: #{tpu_custom_call.1} parent=1 // pred_check
      _
    $region27: #{tpu_custom_call.1} parent=1 // pred_check_branch
      %220 = sbr.rel (0) target = $region29
    $region28: #{tpu_custom_call.1} parent=1 // pred_region
      %221 = dma.done [#allocation3], 128
    $region29: #{tpu_custom_call.1} parent=1 // pred_fallthru
      _
    %222 = vsyncpa [#allocation3], 1

</llo_original>
